<compile_context>
chip_gen: v6e
topology: v6e:2x2x1
jax: 0.10.0
libtpu: 0.0.40
codegen_flags: <defaults>
</compile_context>

<pallas_src>
import math

import jax
import jax.numpy as jnp
from jax.experimental import pallas as pl
from jax.experimental.pallas import tpu as pltpu

TILE_B_TARGET = 512   # target batch tile (review: sweep 256-1024; 512 ~ 85% of roofline)
HEAD_COLS = 128       # lane-dense padded width of the fused head matmul
# fused-head column groups (nt_gather first => aligned with the lane-0 output store)
_NTG, _TMG, _NT, _TM = 0, 32, 64, 80


# ----------------------------------------------------------------------------
# Pallas kernel (fixed trunk depth = 3 linear layers, as configured below)
# ----------------------------------------------------------------------------
def joint3y_kernel(x_ref, term_ref,
                   w0_ref, b0_ref, w1_ref, b1_ref, w2_ref, b2_ref,
                   wh_ref, bh_ref,
                   out_ref):
    def leaky(v):
        # torch.nn.LeakyReLU default negative_slope = 0.01
        return jnp.where(v >= 0.0, v, 0.01 * v)

    cdt = w0_ref.dtype          # matmul operand dtype (f32 or bf16); accum stays f32

    # trunk: Linear -> LeakyReLU -> Linear -> LeakyReLU -> Linear
    h = leaky(jnp.dot(x_ref[...], w0_ref[...],
                      preferred_element_type=jnp.float32) + b0_ref[...])
    h = leaky(jnp.dot(h.astype(cdt), w1_ref[...],
                      preferred_element_type=jnp.float32) + b1_ref[...])
    h = jnp.dot(h.astype(cdt), w2_ref[...],
                preferred_element_type=jnp.float32) + b2_ref[...]

    # single fused head matmul (logits + pre-gathered/offset tables), f32 result
    heads = jnp.dot(h.astype(cdt), wh_ref[...],
                    preferred_element_type=jnp.float32) + bh_ref[...]   # (tile_b, 128)

    nt_gather = heads[:, _NTG:_NTG + 27]   # nt_logits @ sel + off (bias/offset folded)
    tm_gather = heads[:, _TMG:_TMG + 27]   # tm_logits @ tsel      (bias folded)
    nt_logits = heads[:, _NT:_NT + 10]     # non-term logits (last col == 0 via padding)
    tm_logits = heads[:, _TM:_TM + 3]      # term logits     (last col == 0 via padding)

    def lse(v):
        m = jnp.max(v, axis=1, keepdims=True)
        return m + jnp.log(jnp.sum(jnp.exp(v - m), axis=1, keepdims=True))

    # compute both reductions first, then blend+store in one expression so the
    # (tile_b, 128) heads value can be retired before the output store.
    lse_nt = lse(nt_logits)
    lse_tm = lse(tm_logits)
    t = term_ref[...]                      # (tile_b, 1)
    out_ref[...] = ((nt_gather - lse_nt) * (1.0 - t)
                    + (tm_gather - 3.0 * lse_tm) * t)


# ----------------------------------------------------------------------------
# Wrapper
# ----------------------------------------------------------------------------
def _pick_tile_b(b8, cap=TILE_B_TARGET):
    """Largest multiple-of-8 divisor of b8 that is <= cap (b8 is a multiple of 8)."""
    t = max(8, min(cap - cap % 8, b8))
    while b8 % t != 0:
        t -= 8
    # v7x: keep >= 2 grid steps so the "parallel" axis feeds both TensorCores
    if b8 // t == 1 and b8 >= 16 and (b8 // 2) % 8 == 0:
        t = b8 // 2
    return t


def joint3y_forward(x, terminal, kparams, tile_cap=TILE_B_TARGET, use_bf16_inputs=False):
    B, in_dim = x.shape
    H = kparams["w0"].shape[1]

    # pad only to a multiple of 8 sublanes (<= 7 extra rows, not a full copy-per-tile)
    b_pad = pl.cdiv(B, 8) * 8
    x = x.astype(jnp.float32)
    terminal = terminal.reshape(-1).astype(jnp.float32)
    if b_pad != B:
        x = jnp.pad(x, ((0, b_pad - B), (0, 0)))
        terminal = jnp.pad(terminal, (0, b_pad - B))
    terminal = terminal.reshape(b_pad, 1)

    tile_b = _pick_tile_b(b_pad, tile_cap)

    in_dtype = jnp.bfloat16 if use_bf16_inputs else jnp.float32
    x = x.astype(in_dtype)
    w0 = kparams["w0"].astype(in_dtype)
    w1 = kparams["w1"].astype(in_dtype)
    w2 = kparams["w2"].astype(in_dtype)
    wh = kparams["wh"].astype(in_dtype)

    args = (x, terminal,
            w0, kparams["b0"], w1, kparams["b1"], w2, kparams["b2"],
            wh, kparams["bh"])

    def resident(a):
        # full-array block, constant index map => DMA'd once, stays VMEM-resident
        return pl.BlockSpec(a.shape, lambda i: (0, 0))

    in_specs = [
        pl.BlockSpec((tile_b, in_dim), lambda i: (i, 0)),   # x (batch-tiled)
        pl.BlockSpec((tile_b, 1), lambda i: (i, 0)),        # terminal mask
    ] + [resident(a) for a in args[2:]]

    # advisory cost hint so XLA can overlap this small call with its neighbors
    flops = 2 * b_pad * (in_dim * H + 2 * H * H + H * HEAD_COLS)
    bytes_accessed = (b_pad * (in_dim * x.dtype.itemsize + 4 + 27 * 4)
                      + sum(int(a.size) * a.dtype.itemsize for a in args[2:]))
    cost = pl.CostEstimate(flops=flops, transcendentals=15 * b_pad,
                           bytes_accessed=bytes_accessed)

    out27 = pl.pallas_call(
        joint3y_kernel,
        out_shape=jax.ShapeDtypeStruct((b_pad, 27), jnp.float32),
        grid_spec=pltpu.PrefetchScalarGridSpec(
            num_scalar_prefetch=0,
            grid=(b_pad // tile_b,),
            in_specs=in_specs,
            out_specs=pl.BlockSpec((tile_b, 27), lambda i: (i, 0)),
        ),
        compiler_params=pltpu.CompilerParams(
            dimension_semantics=("parallel",)),   # dual-TC on v7x; harmless on v5e/v6e
        cost_estimate=cost,
    )(*args)
    return out27[:B].reshape(B, 3, 3, 3)


# ----------------------------------------------------------------------------
# Deterministic parameter construction (unfused, mirrors the torch module)
# ----------------------------------------------------------------------------
def make_params(key, in_dim, num_hidden):
    def linear(key, fan_in, fan_out, pad_out_to=None):
        kw, kb = jax.random.split(key)
        bound = 1.0 / math.sqrt(fan_in)
        w = jax.random.uniform(kw, (fan_in, fan_out), jnp.float32, -bound, bound)
        b = jax.random.uniform(kb, (1, fan_out), jnp.float32, -bound, bound)
        if pad_out_to is not None:
            # extra all-zero output column => logit 0 (the torch.cat'ed zeros column)
            w = jnp.concatenate([w, jnp.zeros((fan_in, pad_out_to - fan_out), jnp.float32)], axis=1)
            b = jnp.concatenate([b, jnp.zeros((1, pad_out_to - fan_out), jnp.float32)], axis=1)
        return w, b

    k0, k1, k2, k3, k4 = jax.random.split(key, 5)
    params = {}
    params["w0"], params["b0"] = linear(k0, in_dim, num_hidden)
    params["w1"], params["b1"] = linear(k1, num_hidden, num_hidden)
    params["w2"], params["b2"] = linear(k2, num_hidden, num_hidden)
    params["wnt"], params["bnt"] = linear(k3, num_hidden, 9, pad_out_to=10)
    params["wt"], params["bt"] = linear(k4, num_hidden, 2, pad_out_to=3)

    # non-terminal column order: [a d e d f k e k h d f k f b g k g i e k h k g i h i c]
    # slice index map: a=0 b=1 c=2 d=3 e=4 f=5 g=6 h=7 i=8 k=9
    col_idx = [0, 3, 4, 3, 5, 9, 4, 9, 7, 3, 5, 9, 5, 1, 6, 9, 6, 8, 4, 9, 7, 9, 6, 8, 7, 8, 2]
    slice_off = [0.0, 0.0, 0.0,
                 -math.log(3.0), -math.log(3.0), -math.log(3.0),
                 -math.log(3.0), -math.log(3.0), -math.log(3.0),
                 -math.log(6.0)]
    sel = jnp.zeros((10, 27), jnp.float32)
    off = jnp.zeros((1, 27), jnp.float32)
    for col, s in enumerate(col_idx):
        sel = sel.at[s, col].set(1.0)
        off = off.at[0, col].set(slice_off[s])
    params["sel"] = sel
    params["off"] = off

    # terminal table: out[:, i*9 + j*3 + k] = t[:, i] + t[:, j] + t[:, k]
    tsel = jnp.zeros((3, 27), jnp.float32)
    for col in range(27):
        i, j, k = col // 9, (col // 3) % 3, col % 3
        for m in (i, j, k):
            tsel = tsel.at[m, col].add(1.0)
    params["tsel"] = tsel
    return params


def fuse_head_params(params):
    """Host-side precompute of the fused (H, 128) head weight/bias used by the kernel."""
    wnt, bnt = params["wnt"], params["bnt"]
    wt, bt = params["wt"], params["bt"]
    sel, off, tsel = params["sel"], params["off"], params["tsel"]
    H = wnt.shape[0]

    wh = jnp.zeros((H, HEAD_COLS), jnp.float32)
    bh = jnp.zeros((1, HEAD_COLS), jnp.float32)
    wh = wh.at[:, _NTG:_NTG + 27].set(wnt @ sel)
    bh = bh.at[:, _NTG:_NTG + 27].set(bnt @ sel + off)
    wh = wh.at[:, _TMG:_TMG + 27].set(wt @ tsel)
    bh = bh.at[:, _TMG:_TMG + 27].set(bt @ tsel)
    wh = wh.at[:, _NT:_NT + 10].set(wnt)
    bh = bh.at[:, _NT:_NT + 10].set(bnt)
    wh = wh.at[:, _TM:_TM + 3].set(wt)
    bh = bh.at[:, _TM:_TM + 3].set(bt)
    return {
        "w0": params["w0"], "b0": params["b0"],
        "w1": params["w1"], "b1": params["b1"],
        "w2": params["w2"], "b2": params["b2"],
        "wh": wh, "bh": bh,
    }


# ----------------------------------------------------------------------------
# Pure-JAX reference (mirrors the PyTorch forward) for validation
# ----------------------------------------------------------------------------
def reference_forward(x, terminal, params):
    def leaky(v):
        return jnp.where(v >= 0.0, v, 0.01 * v)

    h = leaky(x @ params["w0"] + params["b0"])
    h = leaky(h @ params["w1"] + params["b1"])
    h = h @ params["w2"] + params["b2"]
    nt = h @ params["wnt"] + params["bnt"]          # (B,10), last logit already 0
    tm = h @ params["wt"] + params["bt"]            # (B,3),  last logit already 0
    ntp = jax.nn.log_softmax(nt, axis=1)
    tlp = jax.nn.log_softmax(tm, axis=1)
    non_term = ntp @ params["sel"] + params["off"]
    term = tlp @ params["tsel"]
    t = terminal.reshape(-1, 1).astype(jnp.float32)
    out = non_term * (1.0 - t) + term * t
    return out.reshape(-1, 3, 3, 3)


if __name__ == "__main__":
    # module hyperparameters (small, consistent with the forward pass)
    horizon, ndim, num_hidden, num_layers = 8, 2, 32, 3   # num_layers fixed at 3 in the kernel
    in_dim = ndim * horizon

    key = jax.random.PRNGKey(0)
    kx, kt, kp = jax.random.split(key, 3)
    params = make_params(kp, in_dim, num_hidden)
    kparams = fuse_head_params(params)

    # --- small primary check (B=8): f32 path, strict tolerance -------------
    B = 8
    x = jax.random.normal(kx, (B, in_dim), jnp.float32)
    terminal = (jax.random.uniform(kt, (B,)) > 0.5).astype(jnp.float32)

    out = jax.block_until_ready(joint3y_forward(x, terminal, kparams))
    ref = reference_forward(x, terminal, params)
    assert out.shape == (B, 3, 3, 3)
    assert jnp.allclose(out, ref, atol=1e-4, rtol=1e-4), float(jnp.max(jnp.abs(out - ref)))

    # --- bf16-input path (MXU-native), looser tolerance --------------------
    out_bf = jax.block_until_ready(
        joint3y_forward(x, terminal, kparams, use_bf16_inputs=True))
    assert jnp.allclose(out_bf, ref, atol=1e-1, rtol=1e-1), float(jnp.max(jnp.abs(out_bf - ref)))

    # --- ragged batch (B not a multiple of 8) exercises minimal padding ----
    kx2, kt2 = jax.random.split(kx)
    B2 = 37
    x2 = jax.random.normal(kx2, (B2, in_dim), jnp.float32)
    terminal2 = (jax.random.uniform(kt2, (B2,)) > 0.5).astype(jnp.float32)
    out2 = jax.block_until_ready(joint3y_forward(x2, terminal2, kparams))
    ref2 = reference_forward(x2, terminal2, params)
    assert out2.shape == (B2, 3, 3, 3)
    assert jnp.allclose(out2, ref2, atol=1e-4, rtol=1e-4), float(jnp.max(jnp.abs(out2 - ref2)))

    print("KERNEL_OK")
</pallas_src>

<mosaic_0001>
module attributes {stable_mosaic.version = 11 : i64} {
  func.func @joint3y_kernel(%arg0: i32, %arg1: memref<8x16xf32, #tpu.memory_space<vmem>>, %arg2: memref<8x1xf32, #tpu.memory_space<vmem>>, %arg3: memref<16x32xf32, #tpu.memory_space<vmem>>, %arg4: memref<1x32xf32, #tpu.memory_space<vmem>>, %arg5: memref<32x32xf32, #tpu.memory_space<vmem>>, %arg6: memref<1x32xf32, #tpu.memory_space<vmem>>, %arg7: memref<32x32xf32, #tpu.memory_space<vmem>>, %arg8: memref<1x32xf32, #tpu.memory_space<vmem>>, %arg9: memref<32x128xf32, #tpu.memory_space<vmem>>, %arg10: memref<1x128xf32, #tpu.memory_space<vmem>>, %arg11: memref<8x27xf32, #tpu.memory_space<vmem>>) attributes {dimension_semantics = [#tpu.dimension_semantics<parallel>], iteration_bounds = array<i64: 1>, scalar_prefetch = 0 : i64, scratch_operands = 0 : i64, tpu.core_type = #tpu.core_type<tc>, window_params = [{transform_indices = @transform_0, window_bounds = array<i64: 8, 16>}, {transform_indices = @transform_1, window_bounds = array<i64: 8, 1>}, {pipeline_mode = #tpu.pipeline_mode<synchronous>, transform_indices = @transform_2, window_bounds = array<i64: 16, 32>}, {pipeline_mode = #tpu.pipeline_mode<synchronous>, transform_indices = @transform_3, window_bounds = array<i64: 1, 32>}, {pipeline_mode = #tpu.pipeline_mode<synchronous>, transform_indices = @transform_4, window_bounds = array<i64: 32, 32>}, {pipeline_mode = #tpu.pipeline_mode<synchronous>, transform_indices = @transform_5, window_bounds = array<i64: 1, 32>}, {pipeline_mode = #tpu.pipeline_mode<synchronous>, transform_indices = @transform_6, window_bounds = array<i64: 32, 32>}, {pipeline_mode = #tpu.pipeline_mode<synchronous>, transform_indices = @transform_7, window_bounds = array<i64: 1, 32>}, {pipeline_mode = #tpu.pipeline_mode<synchronous>, transform_indices = @transform_8, window_bounds = array<i64: 32, 128>}, {pipeline_mode = #tpu.pipeline_mode<synchronous>, transform_indices = @transform_9, window_bounds = array<i64: 1, 128>}, {transform_indices = @transform_10, window_bounds = array<i64: 8, 27>}]} {
    %c0 = arith.constant 0 : index
    %c0_0 = arith.constant 0 : index
    %0 = vector.load %arg1[%c0, %c0_0] : memref<8x16xf32, #tpu.memory_space<vmem>>, vector<8x16xf32>
    %c0_1 = arith.constant 0 : index
    %c0_2 = arith.constant 0 : index
    %1 = vector.load %arg3[%c0_1, %c0_2] : memref<16x32xf32, #tpu.memory_space<vmem>>, vector<16x32xf32>
    %cst = arith.constant dense<0.000000e+00> : vector<8x32xf32>
    %2 = tpu.matmul %0, %1, %cst {dimension_numbers = #tpu.dot_dimension_numbers<[1], [0], [0], [1], [0, 0, 1, 1], [], []>} : vector<8x16xf32>, vector<16x32xf32>, vector<8x32xf32> -> vector<8x32xf32>
    %c0_3 = arith.constant 0 : index
    %c0_4 = arith.constant 0 : index
    %3 = vector.load %arg4[%c0_3, %c0_4] : memref<1x32xf32, #tpu.memory_space<vmem>>, vector<1x32xf32>
    %4 = vector.broadcast %3 : vector<1x32xf32> to vector<8x32xf32>
    %5 = arith.addf %2, %4 : vector<8x32xf32>
    %cst_5 = arith.constant 0.000000e+00 : f32
    %6 = vector.broadcast %cst_5 : f32 to vector<8x32xf32>
    %7 = arith.cmpf oge, %5, %6 : vector<8x32xf32>
    %cst_6 = arith.constant 0.00999999977 : f32
    %8 = vector.broadcast %cst_6 : f32 to vector<8x32xf32>
    %9 = arith.mulf %8, %5 : vector<8x32xf32>
    %10 = arith.select %7, %5, %9 : vector<8x32xi1>, vector<8x32xf32>
    %c0_7 = arith.constant 0 : index
    %c0_8 = arith.constant 0 : index
    %11 = vector.load %arg5[%c0_7, %c0_8] : memref<32x32xf32, #tpu.memory_space<vmem>>, vector<32x32xf32>
    %cst_9 = arith.constant dense<0.000000e+00> : vector<8x32xf32>
    %12 = tpu.matmul %10, %11, %cst_9 {dimension_numbers = #tpu.dot_dimension_numbers<[1], [0], [0], [1], [0, 0, 1, 1], [], []>} : vector<8x32xf32>, vector<32x32xf32>, vector<8x32xf32> -> vector<8x32xf32>
    %c0_10 = arith.constant 0 : index
    %c0_11 = arith.constant 0 : index
    %13 = vector.load %arg6[%c0_10, %c0_11] : memref<1x32xf32, #tpu.memory_space<vmem>>, vector<1x32xf32>
    %14 = vector.broadcast %13 : vector<1x32xf32> to vector<8x32xf32>
    %15 = arith.addf %12, %14 : vector<8x32xf32>
    %cst_12 = arith.constant 0.000000e+00 : f32
    %16 = vector.broadcast %cst_12 : f32 to vector<8x32xf32>
    %17 = arith.cmpf oge, %15, %16 : vector<8x32xf32>
    %cst_13 = arith.constant 0.00999999977 : f32
    %18 = vector.broadcast %cst_13 : f32 to vector<8x32xf32>
    %19 = arith.mulf %18, %15 : vector<8x32xf32>
    %20 = arith.select %17, %15, %19 : vector<8x32xi1>, vector<8x32xf32>
    %c0_14 = arith.constant 0 : index
    %c0_15 = arith.constant 0 : index
    %21 = vector.load %arg7[%c0_14, %c0_15] : memref<32x32xf32, #tpu.memory_space<vmem>>, vector<32x32xf32>
    %cst_16 = arith.constant dense<0.000000e+00> : vector<8x32xf32>
    %22 = tpu.matmul %20, %21, %cst_16 {dimension_numbers = #tpu.dot_dimension_numbers<[1], [0], [0], [1], [0, 0, 1, 1], [], []>} : vector<8x32xf32>, vector<32x32xf32>, vector<8x32xf32> -> vector<8x32xf32>
    %c0_17 = arith.constant 0 : index
    %c0_18 = arith.constant 0 : index
    %23 = vector.load %arg8[%c0_17, %c0_18] : memref<1x32xf32, #tpu.memory_space<vmem>>, vector<1x32xf32>
    %24 = vector.broadcast %23 : vector<1x32xf32> to vector<8x32xf32>
    %25 = arith.addf %22, %24 : vector<8x32xf32>
    %c0_19 = arith.constant 0 : index
    %c0_20 = arith.constant 0 : index
    %26 = vector.load %arg9[%c0_19, %c0_20] : memref<32x128xf32, #tpu.memory_space<vmem>>, vector<32x128xf32>
    %cst_21 = arith.constant dense<0.000000e+00> : vector<8x128xf32>
    %27 = tpu.matmul %25, %26, %cst_21 {dimension_numbers = #tpu.dot_dimension_numbers<[1], [0], [0], [1], [0, 0, 1, 1], [], []>} : vector<8x32xf32>, vector<32x128xf32>, vector<8x128xf32> -> vector<8x128xf32>
    %c0_22 = arith.constant 0 : index
    %c0_23 = arith.constant 0 : index
    %28 = vector.load %arg10[%c0_22, %c0_23] : memref<1x128xf32, #tpu.memory_space<vmem>>, vector<1x128xf32>
    %29 = vector.broadcast %28 : vector<1x128xf32> to vector<8x128xf32>
    %30 = arith.addf %27, %29 : vector<8x128xf32>
    %31 = vector.extract_strided_slice %30 {offsets = [0, 0], sizes = [8, 27], strides = [1, 1]} : vector<8x128xf32> to vector<8x27xf32>
    %32 = vector.extract_strided_slice %30 {offsets = [0, 32], sizes = [8, 27], strides = [1, 1]} : vector<8x128xf32> to vector<8x27xf32>
    %33 = vector.extract_strided_slice %30 {offsets = [0, 64], sizes = [8, 10], strides = [1, 1]} : vector<8x128xf32> to vector<8x10xf32>
    %34 = vector.extract_strided_slice %30 {offsets = [0, 80], sizes = [8, 3], strides = [1, 1]} : vector<8x128xf32> to vector<8x3xf32>
    %cst_24 = arith.constant dense<0xFF800000> : vector<8xf32>
    %35 = vector.multi_reduction <maximumf>, %33, %cst_24 [1] : vector<8x10xf32> to vector<8xf32>
    %36 = vector.shape_cast %35 : vector<8xf32> to vector<8x1xf32>
    %37 = vector.broadcast %36 : vector<8x1xf32> to vector<8x10xf32>
    %38 = arith.subf %33, %37 : vector<8x10xf32>
    %39 = math.exp %38 : vector<8x10xf32>
    %cst_25 = arith.constant dense<0.000000e+00> : vector<8xf32>
    %40 = vector.multi_reduction <add>, %39, %cst_25 [1] : vector<8x10xf32> to vector<8xf32>
    %41 = vector.shape_cast %40 : vector<8xf32> to vector<8x1xf32>
    %42 = math.log %41 : vector<8x1xf32>
    %43 = arith.addf %36, %42 : vector<8x1xf32>
    %cst_26 = arith.constant dense<0xFF800000> : vector<8xf32>
    %44 = vector.multi_reduction <maximumf>, %34, %cst_26 [1] : vector<8x3xf32> to vector<8xf32>
    %45 = vector.shape_cast %44 : vector<8xf32> to vector<8x1xf32>
    %46 = vector.broadcast %45 : vector<8x1xf32> to vector<8x3xf32>
    %47 = arith.subf %34, %46 : vector<8x3xf32>
    %48 = math.exp %47 : vector<8x3xf32>
    %cst_27 = arith.constant dense<0.000000e+00> : vector<8xf32>
    %49 = vector.multi_reduction <add>, %48, %cst_27 [1] : vector<8x3xf32> to vector<8xf32>
    %50 = vector.shape_cast %49 : vector<8xf32> to vector<8x1xf32>
    %51 = math.log %50 : vector<8x1xf32>
    %52 = arith.addf %45, %51 : vector<8x1xf32>
    %c0_28 = arith.constant 0 : index
    %c0_29 = arith.constant 0 : index
    %53 = vector.load %arg2[%c0_28, %c0_29] : memref<8x1xf32, #tpu.memory_space<vmem>>, vector<8x1xf32>
    %54 = vector.broadcast %43 : vector<8x1xf32> to vector<8x27xf32>
    %55 = arith.subf %31, %54 : vector<8x27xf32>
    %cst_30 = arith.constant 1.000000e+00 : f32
    %56 = vector.broadcast %cst_30 : f32 to vector<8x1xf32>
    %57 = arith.subf %56, %53 : vector<8x1xf32>
    %58 = vector.broadcast %57 : vector<8x1xf32> to vector<8x27xf32>
    %59 = arith.mulf %55, %58 : vector<8x27xf32>
    %cst_31 = arith.constant 3.000000e+00 : f32
    %60 = vector.broadcast %cst_31 : f32 to vector<8x1xf32>
    %61 = arith.mulf %60, %52 : vector<8x1xf32>
    %62 = vector.broadcast %61 : vector<8x1xf32> to vector<8x27xf32>
    %63 = arith.subf %32, %62 : vector<8x27xf32>
    %64 = vector.broadcast %53 : vector<8x1xf32> to vector<8x27xf32>
    %65 = arith.mulf %63, %64 : vector<8x27xf32>
    %66 = arith.addf %59, %65 : vector<8x27xf32>
    %c0_32 = arith.constant 0 : index
    %c0_33 = arith.constant 0 : index
    %67 = vector.load %arg11[%c0_32, %c0_33] : memref<8x27xf32, #tpu.memory_space<vmem>>, vector<8x27xf32>
    tpu.vector_store %arg11[%c0_32, %c0_33], %66 {strides = array<i32>} : memref<8x27xf32, #tpu.memory_space<vmem>>, vector<8x27xf32>,
    return
  }
  func.func @transform_0(%arg0: i32) -> (i32, i32) {
    %c0_i32 = arith.constant 0 : i32
    %c0_i32_0 = arith.constant 0 : i32
    return %arg0, %c0_i32 : i32, i32
  }
  func.func @transform_1(%arg0: i32) -> (i32, i32) {
    %c0_i32 = arith.constant 0 : i32
    %c0_i32_0 = arith.constant 0 : i32
    return %arg0, %c0_i32 : i32, i32
  }
  func.func @transform_2(%arg0: i32) -> (i32, i32) {
    %c0_i32 = arith.constant 0 : i32
    %c0_i32_0 = arith.constant 0 : i32
    %c0_i32_1 = arith.constant 0 : i32
    return %c0_i32, %c0_i32_0 : i32, i32
  }
  func.func @transform_3(%arg0: i32) -> (i32, i32) {
    %c0_i32 = arith.constant 0 : i32
    %c0_i32_0 = arith.constant 0 : i32
    %c0_i32_1 = arith.constant 0 : i32
    return %c0_i32, %c0_i32_0 : i32, i32
  }
  func.func @transform_4(%arg0: i32) -> (i32, i32) {
    %c0_i32 = arith.constant 0 : i32
    %c0_i32_0 = arith.constant 0 : i32
    %c0_i32_1 = arith.constant 0 : i32
    return %c0_i32, %c0_i32_0 : i32, i32
  }
  func.func @transform_5(%arg0: i32) -> (i32, i32) {
    %c0_i32 = arith.constant 0 : i32
    %c0_i32_0 = arith.constant 0 : i32
    %c0_i32_1 = arith.constant 0 : i32
    return %c0_i32, %c0_i32_0 : i32, i32
  }
  func.func @transform_6(%arg0: i32) -> (i32, i32) {
    %c0_i32 = arith.constant 0 : i32
    %c0_i32_0 = arith.constant 0 : i32
    %c0_i32_1 = arith.constant 0 : i32
    return %c0_i32, %c0_i32_0 : i32, i32
  }
  func.func @transform_7(%arg0: i32) -> (i32, i32) {
    %c0_i32 = arith.constant 0 : i32
    %c0_i32_0 = arith.constant 0 : i32
    %c0_i32_1 = arith.constant 0 : i32
    return %c0_i32, %c0_i32_0 : i32, i32
  }
  func.func @transform_8(%arg0: i32) -> (i32, i32) {
    %c0_i32 = arith.constant 0 : i32
    %c0_i32_0 = arith.constant 0 : i32
    %c0_i32_1 = arith.constant 0 : i32
    return %c0_i32, %c0_i32_0 : i32, i32
  }
  func.func @transform_9(%arg0: i32) -> (i32, i32) {
    %c0_i32 = arith.constant 0 : i32
    %c0_i32_0 = arith.constant 0 : i32
    %c0_i32_1 = arith.constant 0 : i32
    return %c0_i32, %c0_i32_0 : i32, i32
  }
  func.func @transform_10(%arg0: i32) -> (i32, i32) {
    %c0_i32 = arith.constant 0 : i32
    %c0_i32_0 = arith.constant 0 : i32
    return %arg0, %c0_i32 : i32, i32
  }
}

</mosaic_0001>

<llo_original>
// kernel: tpu_custom_call.1
$region0: #{tpu_custom_call.1}
  #allocation0 [shape = 'u32[]', space=smem, size = 0x4, offset = 0x4, fixed_abs, tag = 'smem constant byte address 0x4 - core index']
  #allocation1 [shape = 'u32[144,128]{1,0:T(1,128)}', space=vmem, size = 0x12000, scoped, tag = 'internal scratch']
  %s0 = inlined_call_operand.vmem [shape: f32[8,16], index: 0, kind: input, shape index: {}]
  %s1 = inlined_call_operand.vmem [shape: f32[8,1], index: 1, kind: input, shape index: {}]
  %s2 = inlined_call_operand.hbm [shape: f32[16,32], index: 2, kind: input, shape index: {}]
  %s3 = inlined_call_operand.vmem [shape: f32[1,32], index: 3, kind: input, shape index: {}]
  %s4 = inlined_call_operand.hbm [shape: f32[32,32], index: 4, kind: input, shape index: {}]
  %s5 = inlined_call_operand.vmem [shape: f32[1,32], index: 5, kind: input, shape index: {}]
  %s6 = inlined_call_operand.hbm [shape: f32[32,32], index: 6, kind: input, shape index: {}]
  %s7 = inlined_call_operand.vmem [shape: f32[1,32], index: 7, kind: input, shape index: {}]
  %s8 = inlined_call_operand.hbm [shape: f32[32,128], index: 8, kind: input, shape index: {}]
  %s9 = inlined_call_operand.vmem [shape: f32[1,128], index: 9, kind: input, shape index: {}]
  %s10 = inlined_call_operand.hbm [shape: f32[8,27], index: 10, kind: output, shape index: {}]
  %s11 = sld [smem:[#allocation0]]
  $region66: #{tpu_custom_call.1} parent=0
    _
  %s13 = ssub.s32 1, %s11
  %s14 = scalar_select 0, %s13, %s11
  $region1: #{tpu_custom_call.1} parent=0
    #allocation2 [shape = 'u8[8192]{0}', space=vmem, size = 0x2000, scoped, tag = 'input window, operand 2, single buffered']
    #allocation3 [shape = 's32[1]{0}', space=sflag, size = 0x4, scoped, tag = 'scoped memory for tpu_custom_call.1']
    #allocation4 [shape = 's32[1]{0}', space=sflag, size = 0x4, scoped, tag = 'scoped memory for tpu_custom_call.1']
    #allocation5 [shape = 'u8[16384]{0}', space=vmem, size = 0x4000, scoped, tag = 'input window, operand 4, single buffered']
    #allocation6 [shape = 's32[1]{0}', space=sflag, size = 0x4, scoped, tag = 'scoped memory for tpu_custom_call.1']
    #allocation7 [shape = 'u8[16384]{0}', space=vmem, size = 0x4000, scoped, tag = 'input window, operand 6, single buffered']
    #allocation8 [shape = 'u8[16384]{0}', space=vmem, size = 0x4000, scoped, tag = 'input window, operand 8, single buffered']
    #allocation9 [shape = 's32[1]{0}', space=sflag, size = 0x4, scoped, tag = 'scoped memory for tpu_custom_call.1']
    #allocation10 [shape = 'u8[4096]{0}', space=vmem, size = 0x1000, scoped, tag = 'output window, operand 0, single buffered']
    %15 = vsyncpa [#allocation3], 0
    %16 = vsyncpa [#allocation6], 0
    %17 = vsyncpa [#allocation9], 0
    %18 = vsyncpa [#allocation4], 0
    // Predicated region
    $region2: #{tpu_custom_call.1} parent=1 // pred_check
      _
    $region3: #{tpu_custom_call.1} parent=1 // pred_check_branch
      %20 = sbr.rel (0) target = $region5
    $region4: #{tpu_custom_call.1} parent=1 // pred_region
      _
    $region5: #{tpu_custom_call.1} parent=1 // pred_fallthru
      _
    // Predicated region
    $region6: #{tpu_custom_call.1} parent=1 // pred_check
      _
    $region7: #{tpu_custom_call.1} parent=1 // pred_check_branch
      %22 = sbr.rel (0) target = $region9
    $region8: #{tpu_custom_call.1} parent=1 // pred_region
      _
    $region9: #{tpu_custom_call.1} parent=1 // pred_fallthru
      _
    // Predicated region
    $region10: #{tpu_custom_call.1} parent=1 // pred_check
      _
    $region11: #{tpu_custom_call.1} parent=1 // pred_check_branch
      %24 = sbr.rel (0) target = $region13
    $region12: #{tpu_custom_call.1} parent=1 // pred_region
      %s26 = ssub.s32 256, 256
      %27 = vsyncadd [#allocation3], %s26
      %s28 = sshll.u32 [#allocation2], 4
      %s29 = int_to_ptr.vmem [resolvable:$true] %s28
      %34 = dma.hbm_to_vmem [thread:$0]  %s2, 256, %s29, [#allocation3], 128, 128, 8
    $region13: #{tpu_custom_call.1} parent=1 // pred_fallthru
      _
    // Predicated region
    $region14: #{tpu_custom_call.1} parent=1 // pred_check
      _
    $region15: #{tpu_custom_call.1} parent=1 // pred_check_branch
      %36 = sbr.rel (0) target = $region17
    $region16: #{tpu_custom_call.1} parent=1 // pred_region
      _
    $region17: #{tpu_custom_call.1} parent=1 // pred_fallthru
      _
    // Predicated region
    $region18: #{tpu_custom_call.1} parent=1 // pred_check
      _
    $region19: #{tpu_custom_call.1} parent=1 // pred_check_branch
      %38 = sbr.rel (0) target = $region21
    $region20: #{tpu_custom_call.1} parent=1 // pred_region
      %s40 = ssub.s32 512, 512
      %41 = vsyncadd [#allocation6], %s40
      %s42 = sshll.u32 [#allocation5], 4
      %s43 = int_to_ptr.vmem [resolvable:$true] %s42
      %48 = dma.hbm_to_vmem [thread:$0]  %s4, 512, %s43, [#allocation6], 128, 128, 8
    $region21: #{tpu_custom_call.1} parent=1 // pred_fallthru
      _
    // Predicated region
    $region22: #{tpu_custom_call.1} parent=1 // pred_check
      _
    $region23: #{tpu_custom_call.1} parent=1 // pred_check_branch
      %50 = sbr.rel (0) target = $region25
    $region24: #{tpu_custom_call.1} parent=1 // pred_region
      _
    $region25: #{tpu_custom_call.1} parent=1 // pred_fallthru
      _
    // Predicated region
    $region26: #{tpu_custom_call.1} parent=1 // pred_check
      _
    $region27: #{tpu_custom_call.1} parent=1 // pred_check_branch
      %52 = sbr.rel (0) target = $region29
    $region28: #{tpu_custom_call.1} parent=1 // pred_region
      %s54 = ssub.s32 512, 512
      %55 = vsyncadd [#allocation6], %s54
      %s56 = sshll.u32 [#allocation7], 4
      %s57 = int_to_ptr.vmem [resolvable:$true] %s56
      %62 = dma.hbm_to_vmem [thread:$0]  %s6, 512, %s57, [#allocation6], 128, 128, 8
    $region29: #{tpu_custom_call.1} parent=1 // pred_fallthru
      _
    // Predicated region
    $region30: #{tpu_custom_call.1} parent=1 // pred_check
      _
    $region31: #{tpu_custom_call.1} parent=1 // pred_check_branch
      %64 = sbr.rel (0) target = $region33
    $region32: #{tpu_custom_call.1} parent=1 // pred_region
      _
    $region33: #{tpu_custom_call.1} parent=1 // pred_fallthru
      _
    // Predicated region
    $region34: #{tpu_custom_call.1} parent=1 // pred_check
      _
    $region35: #{tpu_custom_call.1} parent=1 // pred_check_branch
      %66 = sbr.rel (0) target = $region37
    $region36: #{tpu_custom_call.1} parent=1 // pred_region
      %s68 = ssub.s32 512, 512
      %69 = vsyncadd [#allocation9], %s68
      %s70 = sshll.u32 [#allocation8], 4
      %s71 = int_to_ptr.vmem [resolvable:$true] %s70
      %76 = dma.hbm_to_vmem [thread:$0]  %s8, 512, %s71, [#allocation9], 128, 128, 8
    $region37: #{tpu_custom_call.1} parent=1 // pred_fallthru
      _
    // Predicated region
    $region38: #{tpu_custom_call.1} parent=1 // pred_check
      _
    $region39: #{tpu_custom_call.1} parent=1 // pred_check_branch
      %78 = sbr.rel (0) target = $region41
    $region40: #{tpu_custom_call.1} parent=1 // pred_region
      _
    $region41: #{tpu_custom_call.1} parent=1 // pred_fallthru
      _
    // Predicated region
    $region42: #{tpu_custom_call.1} parent=1 // pred_check
      _
    $region43: #{tpu_custom_call.1} parent=1 // pred_check_branch
      %80 = sbr.rel (0) target = $region45
    $region44: #{tpu_custom_call.1} parent=1 // pred_region
      %81 = dma.done [#allocation3], 256
    $region45: #{tpu_custom_call.1} parent=1 // pred_fallthru
      _
    // Predicated region
    $region46: #{tpu_custom_call.1} parent=1 // pred_check
      _
    $region47: #{tpu_custom_call.1} parent=1 // pred_check_branch
      %83 = sbr.rel (0) target = $region49
    $region48: #{tpu_custom_call.1} parent=1 // pred_region
      %84 = dma.done [#allocation6], 512
    $region49: #{tpu_custom_call.1} parent=1 // pred_fallthru
      _
    // Predicated region
    $region50: #{tpu_custom_call.1} parent=1 // pred_check
      _
    $region51: #{tpu_custom_call.1} parent=1 // pred_check_branch
      %86 = sbr.rel (0) target = $region53
    $region52: #{tpu_custom_call.1} parent=1 // pred_region
      %87 = dma.done [#allocation6], 512
    $region53: #{tpu_custom_call.1} parent=1 // pred_fallthru
      _
    // Predicated region
    $region54: #{tpu_custom_call.1} parent=1 // pred_check
      _
    $region55: #{tpu_custom_call.1} parent=1 // pred_check_branch
      %89 = sbr.rel (0) target = $region57
    $region56: #{tpu_custom_call.1} parent=1 // pred_region
      %90 = dma.done [#allocation9], 512
    $region57: #{tpu_custom_call.1} parent=1 // pred_fallthru
      _
    %v91 = vld [vmem:[%s0] sm:$0xff]
    %v92 = vld [vmem:[#allocation2] sm:$0xff]
    %v93 = vld [vmem:[#allocation2 + $0x8] sm:$0xff]
    %v94 = vld [vmem:[%s3] sm:$0x1]
    %v96 = vlaneseq
    %v97 = vshrl.u32 %v96, 7
    %v98 = vsub.s32 0, %v97
    %v99 = vrot.slane %v94, %v98
    %vm101 = vcmask 130048
    %v103 = vsel %vm101, %v91, 0
    %105 = vmatprep.subr.mxu0 0.0
    %106 = vmatpush1.msra.mxu0 0.0
    %107 = vmatprep.subr.mxu0 0.0
    %108 = vmatpush1.msra.mxu0 0.0
    %109 = vmatprep.subr.mxu0 0.0
    %110 = vmatpush1.msra.mxu0 0.0
    %111 = vmatprep.subr.mxu0 0.0
    %112 = vmatpush1.msra.mxu0 0.0
    %113 = vmatprep.subr.mxu0 0.0
    %114 = vmatpush1.msra.mxu0 0.0
    %115 = vmatprep.subr.mxu0 0.0
    %116 = vmatpush1.msra.mxu0 0.0
    %117 = vmatprep.subr.mxu0 0.0
    %118 = vmatpush1.msra.mxu0 0.0
    %119 = vmatprep.subr.mxu0 0.0
    %120 = vmatpush1.msra.mxu0 0.0
    %121 = vmatprep.subr.mxu0 0.0
    %122 = vmatpush1.msra.mxu0 0.0
    %123 = vmatprep.subr.mxu0 0.0
    %124 = vmatpush1.msra.mxu0 0.0
    %125 = vmatprep.subr.mxu0 0.0
    %126 = vmatpush1.msra.mxu0 0.0
    %127 = vmatprep.subr.mxu0 0.0
    %128 = vmatpush1.msra.mxu0 0.0
    %129 = vmatprep.subr.mxu0 0.0
    %130 = vmatpush1.msra.mxu0 0.0
    %131 = vmatprep.subr.mxu0 0.0
    %132 = vmatpush1.msra.mxu0 0.0
    %133 = vmatprep.subr.mxu0 0.0
    %134 = vmatpush1.msra.mxu0 %v93
    %135 = vmatprep.subr.mxu0 0.0
    %136 = vmatpush1.msra.mxu0 %v92
    %137 = vmatprep.subr.mxu0 0.0
    %138 = vmatpush2.msra.mxu0 0.0
    %139 = vmatprep.subr.mxu0 0.0
    %140 = vmatpush2.msra.mxu0 0.0
    %141 = vmatprep.subr.mxu0 0.0
    %142 = vmatpush2.msra.mxu0 0.0
    %143 = vmatprep.subr.mxu0 0.0
    %144 = vmatpush2.msra.mxu0 0.0
    %145 = vmatprep.subr.mxu0 0.0
    %146 = vmatpush2.msra.mxu0 0.0
    %147 = vmatprep.subr.mxu0 0.0
    %148 = vmatpush2.msra.mxu0 0.0
    %149 = vmatprep.subr.mxu0 0.0
    %150 = vmatpush2.msra.mxu0 0.0
    %151 = vmatprep.subr.mxu0 0.0
    %152 = vmatpush2.msra.mxu0 0.0
    %153 = vmatprep.subr.mxu0 0.0
    %154 = vmatpush2.msra.mxu0 0.0
    %155 = vmatprep.subr.mxu0 0.0
    %156 = vmatpush2.msra.mxu0 0.0
    %157 = vmatprep.subr.mxu0 0.0
    %158 = vmatpush2.msra.mxu0 0.0
    %159 = vmatprep.subr.mxu0 0.0
    %160 = vmatpush2.msra.mxu0 0.0
    %161 = vmatprep.subr.mxu0 0.0
    %162 = vmatpush2.msra.mxu0 0.0
    %163 = vmatprep.subr.mxu0 0.0
    %164 = vmatpush2.msra.mxu0 0.0
    %165 = vmatprep.subr.mxu0 0.0
    %166 = vmatpush2.msra.mxu0 0.0
    %167 = vmatprep.subr.mxu0 0.0
    %168 = vmatpush2.msra.mxu0 0.0
    %169 = vmatprep.mubr.f32.mxu0 0.0
    %170 = vmatmul.mubr.f32.gmra.mxu0 %v103
    %v171 = vpop.f32.mrf.mxu0
    %v172 = vadd.f32 %v99, %v171
    %v173 = vpop.f32.mrf.mxu0
    %174 = vdwg.mxu0
    %vm175 = vcmp.ge.f32.partialorder %v172, 0.0
    %v176 = vmul.f32 %v172, 0.01
    %v177 = vsel %vm175, %v172, %v176
    %v178 = vld [vmem:[#allocation5] sm:$0xff]
    %v179 = vld [vmem:[#allocation5 + $0x8] sm:$0xff]
    %v180 = vld [vmem:[#allocation5 + $0x10] sm:$0xff]
    %v181 = vld [vmem:[#allocation5 + $0x18] sm:$0xff]
    %v182 = vld [vmem:[%s5] sm:$0x1]
    %v184 = vlaneseq
    %v185 = vshrl.u32 %v184, 7
    %v186 = vsub.s32 0, %v185
    %v187 = vrot.slane %v182, %v186
    %vm189 = vcmask 261120
    %v191 = vsel %vm189, %v177, 0
    %193 = vmatprep.subr.mxu0 0.0
    %194 = vmatpush1.msra.mxu0 0.0
    %195 = vmatprep.subr.mxu0 0.0
    %196 = vmatpush1.msra.mxu0 0.0
    %197 = vmatprep.subr.mxu0 0.0
    %198 = vmatpush1.msra.mxu0 0.0
    %199 = vmatprep.subr.mxu0 0.0
    %200 = vmatpush1.msra.mxu0 0.0
    %201 = vmatprep.subr.mxu0 0.0
    %202 = vmatpush1.msra.mxu0 0.0
    %203 = vmatprep.subr.mxu0 0.0
    %204 = vmatpush1.msra.mxu0 0.0
    %205 = vmatprep.subr.mxu0 0.0
    %206 = vmatpush1.msra.mxu0 0.0
    %207 = vmatprep.subr.mxu0 0.0
    %208 = vmatpush1.msra.mxu0 0.0
    %209 = vmatprep.subr.mxu0 0.0
    %210 = vmatpush1.msra.mxu0 0.0
    %211 = vmatprep.subr.mxu0 0.0
    %212 = vmatpush1.msra.mxu0 0.0
    %213 = vmatprep.subr.mxu0 0.0
    %214 = vmatpush1.msra.mxu0 0.0
    %215 = vmatprep.subr.mxu0 0.0
    %216 = vmatpush1.msra.mxu0 0.0
    %217 = vmatprep.subr.mxu0 0.0
    %218 = vmatpush1.msra.mxu0 %v181
    %219 = vmatprep.subr.mxu0 0.0
    %220 = vmatpush1.msra.mxu0 %v180
    %221 = vmatprep.subr.mxu0 0.0
    %222 = vmatpush1.msra.mxu0 %v179
    %223 = vmatprep.subr.mxu0 0.0
    %224 = vmatpush1.msra.mxu0 %v178
    %225 = vmatprep.subr.mxu0 0.0
    %226 = vmatpush2.msra.mxu0 0.0
    %227 = vmatprep.subr.mxu0 0.0
    %228 = vmatpush2.msra.mxu0 0.0
    %229 = vmatprep.subr.mxu0 0.0
    %230 = vmatpush2.msra.mxu0 0.0
    %231 = vmatprep.subr.mxu0 0.0
    %232 = vmatpush2.msra.mxu0 0.0
    %233 = vmatprep.subr.mxu0 0.0
    %234 = vmatpush2.msra.mxu0 0.0
    %235 = vmatprep.subr.mxu0 0.0
    %236 = vmatpush2.msra.mxu0 0.0
    %237 = vmatprep.subr.mxu0 0.0
    %238 = vmatpush2.msra.mxu0 0.0
    %239 = vmatprep.subr.mxu0 0.0
    %240 = vmatpush2.msra.mxu0 0.0
    %241 = vmatprep.subr.mxu0 0.0
    %242 = vmatpush2.msra.mxu0 0.0
    %243 = vmatprep.subr.mxu0 0.0
    %244 = vmatpush2.msra.mxu0 0.0
    %245 = vmatprep.subr.mxu0 0.0
    %246 = vmatpush2.msra.mxu0 0.0
    %247 = vmatprep.subr.mxu0 0.0
    %248 = vmatpush2.msra.mxu0 0.0
    %249 = vmatprep.subr.mxu0 0.0
    %250 = vmatpush2.msra.mxu0 0.0
    %251 = vmatprep.subr.mxu0 0.0
    %252 = vmatpush2.msra.mxu0 0.0
    %253 = vmatprep.subr.mxu0 0.0
    %254 = vmatpush2.msra.mxu0 0.0
    %255 = vmatprep.subr.mxu0 0.0
    %256 = vmatpush2.msra.mxu0 0.0
    %257 = vmatprep.mubr.f32.mxu0 0.0
    %258 = vmatmul.mubr.f32.gmra.mxu0 %v191
    %v259 = vpop.f32.mrf.mxu0
    %v260 = vadd.f32 %v187, %v259
    %v261 = vpop.f32.mrf.mxu0
    %262 = vdwg.mxu0
    %vm263 = vcmp.ge.f32.partialorder %v260, 0.0
    %v264 = vmul.f32 %v260, 0.01
    %v265 = vsel %vm263, %v260, %v264
    %v266 = vld [vmem:[#allocation7] sm:$0xff]
    %v267 = vld [vmem:[#allocation7 + $0x8] sm:$0xff]
    %v268 = vld [vmem:[#allocation7 + $0x10] sm:$0xff]
    %v269 = vld [vmem:[#allocation7 + $0x18] sm:$0xff]
    %v270 = vld [vmem:[%s7] sm:$0x1]
    %v272 = vlaneseq
    %v273 = vshrl.u32 %v272, 7
    %v274 = vsub.s32 0, %v273
    %v275 = vrot.slane %v270, %v274
    %v278 = vsel %vm189, %v265, 0
    %280 = vmatprep.subr.mxu0 0.0
    %281 = vmatpush1.msra.mxu0 0.0
    %282 = vmatprep.subr.mxu0 0.0
    %283 = vmatpush1.msra.mxu0 0.0
    %284 = vmatprep.subr.mxu0 0.0
    %285 = vmatpush1.msra.mxu0 0.0
    %286 = vmatprep.subr.mxu0 0.0
    %287 = vmatpush1.msra.mxu0 0.0
    %288 = vmatprep.subr.mxu0 0.0
    %289 = vmatpush1.msra.mxu0 0.0
    %290 = vmatprep.subr.mxu0 0.0
    %291 = vmatpush1.msra.mxu0 0.0
    %292 = vmatprep.subr.mxu0 0.0
    %293 = vmatpush1.msra.mxu0 0.0
    %294 = vmatprep.subr.mxu0 0.0
    %295 = vmatpush1.msra.mxu0 0.0
    %296 = vmatprep.subr.mxu0 0.0
    %297 = vmatpush1.msra.mxu0 0.0
    %298 = vmatprep.subr.mxu0 0.0
    %299 = vmatpush1.msra.mxu0 0.0
    %300 = vmatprep.subr.mxu0 0.0
    %301 = vmatpush1.msra.mxu0 0.0
    %302 = vmatprep.subr.mxu0 0.0
    %303 = vmatpush1.msra.mxu0 0.0
    %304 = vmatprep.subr.mxu0 0.0
    %305 = vmatpush1.msra.mxu0 %v269
    %306 = vmatprep.subr.mxu0 0.0
    %307 = vmatpush1.msra.mxu0 %v268
    %308 = vmatprep.subr.mxu0 0.0
    %309 = vmatpush1.msra.mxu0 %v267
    %310 = vmatprep.subr.mxu0 0.0
    %311 = vmatpush1.msra.mxu0 %v266
    %312 = vmatprep.subr.mxu0 0.0
    %313 = vmatpush2.msra.mxu0 0.0
    %314 = vmatprep.subr.mxu0 0.0
    %315 = vmatpush2.msra.mxu0 0.0
    %316 = vmatprep.subr.mxu0 0.0
    %317 = vmatpush2.msra.mxu0 0.0
    %318 = vmatprep.subr.mxu0 0.0
    %319 = vmatpush2.msra.mxu0 0.0
    %320 = vmatprep.subr.mxu0 0.0
    %321 = vmatpush2.msra.mxu0 0.0
    %322 = vmatprep.subr.mxu0 0.0
    %323 = vmatpush2.msra.mxu0 0.0
    %324 = vmatprep.subr.mxu0 0.0
    %325 = vmatpush2.msra.mxu0 0.0
    %326 = vmatprep.subr.mxu0 0.0
    %327 = vmatpush2.msra.mxu0 0.0
    %328 = vmatprep.subr.mxu0 0.0
    %329 = vmatpush2.msra.mxu0 0.0
    %330 = vmatprep.subr.mxu0 0.0
    %331 = vmatpush2.msra.mxu0 0.0
    %332 = vmatprep.subr.mxu0 0.0
    %333 = vmatpush2.msra.mxu0 0.0
    %334 = vmatprep.subr.mxu0 0.0
    %335 = vmatpush2.msra.mxu0 0.0
    %336 = vmatprep.subr.mxu0 0.0
    %337 = vmatpush2.msra.mxu0 0.0
    %338 = vmatprep.subr.mxu0 0.0
    %339 = vmatpush2.msra.mxu0 0.0
    %340 = vmatprep.subr.mxu0 0.0
    %341 = vmatpush2.msra.mxu0 0.0
    %342 = vmatprep.subr.mxu0 0.0
    %343 = vmatpush2.msra.mxu0 0.0
    %344 = vmatprep.mubr.f32.mxu0 0.0
    %345 = vmatmul.mubr.f32.gmra.mxu0 %v278
    %v346 = vpop.f32.mrf.mxu0
    %v347 = vadd.f32 %v275, %v346
    %v348 = vpop.f32.mrf.mxu0
    %349 = vdwg.mxu0
    %v350 = vld [vmem:[#allocation8] sm:$0xff]
    %v351 = vld [vmem:[#allocation8 + $0x8] sm:$0xff]
    %v352 = vld [vmem:[#allocation8 + $0x10] sm:$0xff]
    %v353 = vld [vmem:[#allocation8 + $0x18] sm:$0xff]
    %v354 = vld [vmem:[%s9] sm:$0x1]
    %v356 = vlaneseq
    %v357 = vshrl.u32 %v356, 7
    %v358 = vsub.s32 0, %v357
    %v359 = vrot.slane %v354, %v358
    %v362 = vsel %vm189, %v347, 0
    %364 = vmatprep.subr.mxu0 0.0
    %365 = vmatpush1.msra.mxu0 0.0
    %366 = vmatprep.subr.mxu0 0.0
    %367 = vmatpush1.msra.mxu0 0.0
    %368 = vmatprep.subr.mxu0 0.0
    %369 = vmatpush1.msra.mxu0 0.0
    %370 = vmatprep.subr.mxu0 0.0
    %371 = vmatpush1.msra.mxu0 0.0
    %372 = vmatprep.subr.mxu0 0.0
    %373 = vmatpush1.msra.mxu0 0.0
    %374 = vmatprep.subr.mxu0 0.0
    %375 = vmatpush1.msra.mxu0 0.0
    %376 = vmatprep.subr.mxu0 0.0
    %377 = vmatpush1.msra.mxu0 0.0
    %378 = vmatprep.subr.mxu0 0.0
    %379 = vmatpush1.msra.mxu0 0.0
    %380 = vmatprep.subr.mxu0 0.0
    %381 = vmatpush1.msra.mxu0 0.0
    %382 = vmatprep.subr.mxu0 0.0
    %383 = vmatpush1.msra.mxu0 0.0
    %384 = vmatprep.subr.mxu0 0.0
    %385 = vmatpush1.msra.mxu0 0.0
    %386 = vmatprep.subr.mxu0 0.0
    %387 = vmatpush1.msra.mxu0 0.0
    %388 = vmatprep.subr.mxu0 0.0
    %389 = vmatpush1.msra.mxu0 %v353
    %390 = vmatprep.subr.mxu0 0.0
    %391 = vmatpush1.msra.mxu0 %v352
    %392 = vmatprep.subr.mxu0 0.0
    %393 = vmatpush1.msra.mxu0 %v351
    %394 = vmatprep.subr.mxu0 0.0
    %395 = vmatpush1.msra.mxu0 %v350
    %396 = vmatprep.subr.mxu0 0.0
    %397 = vmatpush2.msra.mxu0 0.0
    %398 = vmatprep.subr.mxu0 0.0
    %399 = vmatpush2.msra.mxu0 0.0
    %400 = vmatprep.subr.mxu0 0.0
    %401 = vmatpush2.msra.mxu0 0.0
    %402 = vmatprep.subr.mxu0 0.0
    %403 = vmatpush2.msra.mxu0 0.0
    %404 = vmatprep.subr.mxu0 0.0
    %405 = vmatpush2.msra.mxu0 0.0
    %406 = vmatprep.subr.mxu0 0.0
    %407 = vmatpush2.msra.mxu0 0.0
    %408 = vmatprep.subr.mxu0 0.0
    %409 = vmatpush2.msra.mxu0 0.0
    %410 = vmatprep.subr.mxu0 0.0
    %411 = vmatpush2.msra.mxu0 0.0
    %412 = vmatprep.subr.mxu0 0.0
    %413 = vmatpush2.msra.mxu0 0.0
    %414 = vmatprep.subr.mxu0 0.0
    %415 = vmatpush2.msra.mxu0 0.0
    %416 = vmatprep.subr.mxu0 0.0
    %417 = vmatpush2.msra.mxu0 0.0
    %418 = vmatprep.subr.mxu0 0.0
    %419 = vmatpush2.msra.mxu0 0.0
    %420 = vmatprep.subr.mxu0 0.0
    %421 = vmatpush2.msra.mxu0 0.0
    %422 = vmatprep.subr.mxu0 0.0
    %423 = vmatpush2.msra.mxu0 0.0
    %424 = vmatprep.subr.mxu0 0.0
    %425 = vmatpush2.msra.mxu0 0.0
    %426 = vmatprep.subr.mxu0 0.0
    %427 = vmatpush2.msra.mxu0 0.0
    %428 = vmatprep.mubr.f32.mxu0 0.0
    %429 = vmatmul.mubr.f32.gmra.mxu0 %v362
    %v430 = vpop.f32.mrf.mxu0
    %v431 = vadd.f32 %v359, %v430
    %v432 = vpop.f32.mrf.mxu0
    %433 = vdwg.mxu0
    %vm434 = vcmask 605696
    %v435 = vsel %vm434, %v431, -inf
    %436 = vmax.xlane.f32.xlu0 %v435
    %v437 = vpop.xlane.xlu0 %436
    %v438 = vsub.f32 %v431, %v437
    %v439 = vmul.f32 %v438, 1.442695
    %v440 = vpow.pop %v439
    %442 = vrot.lane.b32.xlu0 %v440, 64
    %v443 = vpop.permute.xlu0 %442
    %vm445 = vcmask 80896
    %v446 = vsel %vm445, %v443, 0.0
    %447 = vadd.xlane.f32.xlu0 %v446
    %v448 = vpop.xlane.xlu0 %447
    %v449 = vlog2.pop %v448
    %v450 = vmul.f32 %v449, 0.6931472
    %v451 = vadd.f32 %v437, %v450
    %vm452 = vcmask 679552
    %v453 = vsel %vm452, %v431, -inf
    %454 = vmax.xlane.f32.xlu0 %v453
    %v455 = vpop.xlane.xlu0 %454
    %v456 = vsub.f32 %v431, %v455
    %v457 = vmul.f32 %v456, 1.442695
    %v458 = vpow.pop %v457
    %460 = vrot.lane.b32.xlu0 %v458, 48
    %v461 = vpop.permute.xlu0 %460
    %vm463 = vcmask 23552
    %v464 = vsel %vm463, %v461, 0.0
    %465 = vadd.xlane.f32.xlu0 %v464
    %v466 = vpop.xlane.xlu0 %465
    %v467 = vlog2.pop %v466
    %v468 = vmul.f32 %v467, 0.6931472
    %v469 = vadd.f32 %v455, %v468
    %v470 = vld [vmem:[%s1] sm:$0xff]
    %v471 = vsub.f32 %v431, %v451
    %v472 = vsub.f32 1.0, %v470
    %474 = vset.pattern.permute.xlu0 0
    %475 = vperm.xlu0 %474, %v472
    %v476 = vpop.permute.xlu0 %475
    %v478 = vmul.f32 %v471, %v476
    %v479 = vmul.f32 %v469, 3.0
    %v480 = vsub.f32 %v431, %v479
    %482 = vset.pattern.permute.xlu0 0
    %483 = vperm.xlu0 %482, %v470
    %v484 = vpop.permute.xlu0 %483
    %v486 = vmul.f32 %v480, %v484
    %488 = vrot.lane.b32.xlu0 %v486, 96
    %v489 = vpop.permute.xlu0 %488
    %v491 = vadd.f32 %v478, %v489
    %vm492 = vcmask 220160
    %493 = vst.msk [vmem:[#allocation10] sm:$0xff] %vm492, %v491
    // Predicated region
    $region58: #{tpu_custom_call.1} parent=1 // pred_check
      _
    $region59: #{tpu_custom_call.1} parent=1 // pred_check_branch
      %495 = sbr.rel (0) target = $region61
    $region60: #{tpu_custom_call.1} parent=1 // pred_region
      %s497 = ssub.s32 128, 128
      %498 = vsyncadd [#allocation4], %s497
      %s500 = sshll.u32 [#allocation10], 4
      %s501 = int_to_ptr.vmem [resolvable:$true] %s500
      %503 = dma.vmem_to_hbm [thread:$0]  %s501, 128, %s10, [#allocation4]
    $region61: #{tpu_custom_call.1} parent=1 // pred_fallthru
      _
    // Predicated region
    $region62: #{tpu_custom_call.1} parent=1 // pred_check
      _
    $region63: #{tpu_custom_call.1} parent=1 // pred_check_branch
      %505 = sbr.rel (0) target = $region65
    $region64: #{tpu_custom_call.1} parent=1 // pred_region
      %506 = dma.done [#allocation4], 128
    $region65: #{tpu_custom_call.1} parent=1 // pred_fallthru
      _
    %507 = vsyncpa [#allocation3], 1
    %508 = vsyncpa [#allocation6], 1
    %509 = vsyncpa [#allocation9], 1
    %510 = vsyncpa [#allocation4], 1

</llo_original>
